<compile_context>
chip_gen: v7x
topology: tpu7x:2x2x1
jax: 0.10.0
libtpu: 0.0.40
codegen_flags: <defaults>
</compile_context>

<pallas_src>
import functools

import jax
import jax.numpy as jnp
from jax import lax
from jax.experimental import pallas as pl
from jax.experimental.pallas import tpu as pltpu

EPS = 1e-5
LANE = 128


def _round_up(x, m):
    return ((x + m - 1) // m) * m


# ---------------------------------------------------------------------------
# Pass 1: conv-as-matmul on the MXU + per-tile partial BN statistics.
#   patches : (TM, K)  bf16
#   w       : (K, Cp)  bf16   (Cp = Cout padded to a multiple of 128 lanes)
#   conv    : (TM, Cp) f32    (raw conv output, written back to HBM)
#   stats   : (1, 2, Cp) f32  (per-tile [sum, sum_of_squares])
# ---------------------------------------------------------------------------
def conv_stats_kernel(patches_ref, w_ref, conv_ref, stats_ref):
    acc = jnp.dot(patches_ref[...], w_ref[...],
                  preferred_element_type=jnp.float32)          # (TM, Cp) f32
    conv_ref[...] = acc
    s = jnp.sum(acc, axis=0, keepdims=True)                    # (1, Cp)
    sq = jnp.sum(acc * acc, axis=0, keepdims=True)             # (1, Cp)
    stats_ref[...] = jnp.concatenate([s, sq], axis=0)[None]    # (1, 2, Cp)


# ---------------------------------------------------------------------------
# Pass 2: BN + ReLU with the per-channel scale/shift already folded:
#   a = gamma * rsqrt(var + eps),  b = beta - mean * a
#   y = relu(conv * a + b)         (pure f32 elementwise, mem-bound)
# ---------------------------------------------------------------------------
def bn_relu_kernel(conv_ref, a_ref, b_ref, o_ref):
    o_ref[...] = jnp.maximum(conv_ref[...] * a_ref[...] + b_ref[...], 0.0)


def _im2col_nhwc(x_nhwc, kh, kw, pad):
    """Glue: extract kh x kw patches (stride 1). Returns (N*H*W, kh*kw*C)."""
    N, H, W, C = x_nhwc.shape
    xp = jnp.pad(x_nhwc, ((0, 0), (pad, pad), (pad, pad), (0, 0)))
    taps = []
    for i in range(kh):
        for j in range(kw):
            taps.append(xp[:, i:i + H, j:j + W, :])             # (N, H, W, C)
    patches = jnp.stack(taps, axis=3)                           # (N, H, W, kh*kw, C)
    return patches.reshape(N * H * W, kh * kw * C)


@functools.partial(jax.jit, static_argnames=("kernel_size", "padding", "tm"))
def conv_block_forward(x_nchw, weight_oihw, gamma, beta,
                       kernel_size=3, padding=1, tm=512):
    """ConvBlock forward. x: (N, Cin, H, W), weight: (Cout, Cin, KH, KW)."""
    N, Cin, H, W = x_nchw.shape
    Cout = weight_oihw.shape[0]
    KH = KW = kernel_size
    M = N * H * W
    K = KH * KW * Cin
    Cp = _round_up(Cout, LANE)

    # M tile: multiple of 16 sublanes, no larger than needed.
    tm = max(16, (int(tm) // 16) * 16)
    tm = min(tm, _round_up(M, 16))
    M_pad = _round_up(M, tm)
    num_tiles = M_pad // tm

    # --- Glue: NCHW -> NHWC bf16, im2col, weight to (K, Cp) bf16.  The
    # (2,3,1,0) weight transpose matches the tap-major / Cin-minor patch
    # flattening.  Zero-pad M rows and Cout lanes (zeros contribute nothing to
    # the conv result or the BN sums).
    x_nhwc = jnp.transpose(x_nchw, (0, 2, 3, 1)).astype(jnp.bfloat16)
    patches = _im2col_nhwc(x_nhwc, KH, KW, padding)                 # (M, K)
    patches = jnp.pad(patches, ((0, M_pad - M), (0, 0)))            # (M_pad, K)
    w2d = jnp.transpose(weight_oihw, (2, 3, 1, 0)).reshape(K, Cout)
    w2d = jnp.pad(w2d.astype(jnp.bfloat16), ((0, 0), (0, Cp - Cout)))

    cost1 = pl.CostEstimate(
        flops=2 * M_pad * K * Cp,
        transcendentals=0,
        bytes_accessed=(M_pad * K * 2 + K * Cp * 2
                        + M_pad * Cp * 4 + num_tiles * 2 * Cp * 4))

    conv_out, partial = pl.pallas_call(
        conv_stats_kernel,
        out_shape=(jax.ShapeDtypeStruct((M_pad, Cp), jnp.float32),
                   jax.ShapeDtypeStruct((num_tiles, 2, Cp), jnp.float32)),
        grid=(num_tiles,),
        in_specs=[
            pl.BlockSpec((tm, K), lambda i: (i, 0)),
            pl.BlockSpec((K, Cp), lambda i: (0, 0)),
        ],
        out_specs=[
            pl.BlockSpec((tm, Cp), lambda i: (i, 0)),
            pl.BlockSpec((1, 2, Cp), lambda i: (i, 0, 0)),
        ],
        compiler_params=pltpu.CompilerParams(
            dimension_semantics=("parallel",),           # tiles independent
            vmem_limit_bytes=32 * 1024 * 1024),          # fits 64 MiB v7x TC
        cost_estimate=cost1,
    )(patches, w2d)

    # --- Fold global BN stats (biased variance over N*H*W) + gamma/beta into
    # two per-channel vectors.  Padded rows/channels are all-zero so they do
    # not perturb the sums; divide by the true element count M.
    sums = jnp.sum(partial, axis=0)                       # (2, Cp)
    mean = sums[0] / M
    # One-pass E[x^2]-E[x]^2 in f32; clamp against tiny negative cancellation.
    var = jnp.maximum(sums[1] / M - mean * mean, 0.0)
    inv = lax.rsqrt(var + EPS)
    gamma_p = jnp.pad(gamma.astype(jnp.float32), (0, Cp - Cout))
    beta_p = jnp.pad(beta.astype(jnp.float32), (0, Cp - Cout))
    a = (gamma_p * inv).reshape(1, Cp)
    b = (beta_p - mean * gamma_p * inv).reshape(1, Cp)

    out2d = pl.pallas_call(
        bn_relu_kernel,
        out_shape=jax.ShapeDtypeStruct((M_pad, Cp), jnp.float32),
        grid=(num_tiles,),
        in_specs=[
            pl.BlockSpec((tm, Cp), lambda i: (i, 0)),
            pl.BlockSpec((1, Cp), lambda i: (0, 0)),
            pl.BlockSpec((1, Cp), lambda i: (0, 0)),
        ],
        out_specs=pl.BlockSpec((tm, Cp), lambda i: (i, 0)),
        compiler_params=pltpu.CompilerParams(
            dimension_semantics=("parallel",),
            vmem_limit_bytes=32 * 1024 * 1024),
        input_output_aliases={0: 0},                      # normalize in place
    )(conv_out, a, b)

    # --- Glue: drop padding, back to NCHW.
    out = out2d[:M, :Cout].reshape(N, H, W, Cout)
    return jnp.transpose(out, (0, 3, 1, 2))


def _reference_forward(x_nchw, weight_oihw, gamma, beta, padding=1):
    """Pure-JAX reference reproducing the PyTorch forward (training-mode BN)."""
    y = lax.conv_general_dilated(
        x_nchw.astype(jnp.float32), weight_oihw.astype(jnp.float32),
        window_strides=(1, 1), padding=((padding, padding), (padding, padding)),
        dimension_numbers=("NCHW", "OIHW", "NCHW"))
    mean = jnp.mean(y, axis=(0, 2, 3), keepdims=True)
    var = jnp.mean((y - mean) ** 2, axis=(0, 2, 3), keepdims=True)
    yhat = (y - mean) * lax.rsqrt(var + EPS)
    yhat = yhat * gamma.reshape(1, -1, 1, 1) + beta.reshape(1, -1, 1, 1)
    return jnp.maximum(yhat, 0.0)


if __name__ == "__main__":
    # Small shapes consistent with the module: ConvBlock(in_planes=8, out_planes=16)
    N, Cin, H, W = 2, 8, 16, 16
    Cout, Ksz = 16, 3
    pad = (Ksz - 1) // 2

    key = jax.random.PRNGKey(0)
    kx, kw = jax.random.split(key)
    x = jax.random.normal(kx, (N, Cin, H, W), dtype=jnp.float32)
    # Deterministic synthetic conv weight (Conv2d has bias=False).
    weight = jax.random.normal(kw, (Cout, Cin, Ksz, Ksz), dtype=jnp.float32) * 0.1
    # BatchNorm2d default init: gamma=1, beta=0.
    gamma = jnp.ones((Cout,), dtype=jnp.float32)
    beta = jnp.zeros((Cout,), dtype=jnp.float32)

    # tm=128 exercises a 4-step grid (multi-tile partial-stats path) at this size.
    out = conv_block_forward(x, weight, gamma, beta,
                             kernel_size=Ksz, padding=pad, tm=128)
    out = jax.block_until_ready(out)

    # Reference on bf16-rounded operands (the kernel feeds the MXU bf16 with
    # f32 accumulation), BN/ReLU fully in f32.
    x_bf = x.astype(jnp.bfloat16).astype(jnp.float32)
    w_bf = weight.astype(jnp.bfloat16).astype(jnp.float32)
    ref = jax.block_until_ready(
        _reference_forward(x_bf, w_bf, gamma, beta, padding=pad))

    assert out.shape == (N, Cout, H, W)
    assert jnp.allclose(out, ref, atol=1e-2, rtol=1e-2)

    print("KERNEL_OK")
</pallas_src>

<mosaic_0001>
module attributes {stable_mosaic.version = 11 : i64} {
  func.func @conv_stats_kernel(%arg0: i32, %arg1: memref<128x72xbf16, #tpu.memory_space<vmem>>, %arg2: memref<72x128xbf16, #tpu.memory_space<vmem>>, %arg3: memref<128x128xf32, #tpu.memory_space<vmem>>, %arg4: memref<1x2x128xf32, #tpu.memory_space<vmem>>) attributes {dimension_semantics = [#tpu.dimension_semantics<parallel>], iteration_bounds = array<i64: 4>, scalar_prefetch = 0 : i64, scratch_operands = 0 : i64, tpu.core_type = #tpu.core_type<tc>, window_params = [{transform_indices = @transform_0, window_bounds = array<i64: 128, 72>}, {pipeline_mode = #tpu.pipeline_mode<synchronous>, transform_indices = @transform_1, window_bounds = array<i64: 72, 128>}, {transform_indices = @transform_2, window_bounds = array<i64: 128, 128>}, {transform_indices = @transform_3, window_bounds = array<i64: 1, 2, 128>}]} {
    %c0 = arith.constant 0 : index
    %c0_0 = arith.constant 0 : index
    %0 = vector.load %arg1[%c0, %c0_0] : memref<128x72xbf16, #tpu.memory_space<vmem>>, vector<128x72xbf16>
    %c0_1 = arith.constant 0 : index
    %c0_2 = arith.constant 0 : index
    %1 = vector.load %arg2[%c0_1, %c0_2] : memref<72x128xbf16, #tpu.memory_space<vmem>>, vector<72x128xbf16>
    %cst = arith.constant dense<0.000000e+00> : vector<128x128xf32>
    %2 = tpu.matmul %0, %1, %cst {dimension_numbers = #tpu.dot_dimension_numbers<[1], [0], [0], [1], [0, 0, 1, 1], [], []>} : vector<128x72xbf16>, vector<72x128xbf16>, vector<128x128xf32> -> vector<128x128xf32>
    %c0_3 = arith.constant 0 : index
    %c0_4 = arith.constant 0 : index
    %3 = vector.load %arg3[%c0_3, %c0_4] : memref<128x128xf32, #tpu.memory_space<vmem>>, vector<128x128xf32>
    tpu.vector_store %arg3[%c0_3, %c0_4], %2 {strides = array<i32>} : memref<128x128xf32, #tpu.memory_space<vmem>>, vector<128x128xf32>,
    %cst_5 = arith.constant dense<0.000000e+00> : vector<128xf32>
    %4 = vector.multi_reduction <add>, %2, %cst_5 [0] : vector<128x128xf32> to vector<128xf32>
    %5 = vector.shape_cast %4 : vector<128xf32> to vector<1x128xf32>
    %6 = arith.mulf %2, %2 : vector<128x128xf32>
    %cst_6 = arith.constant dense<0.000000e+00> : vector<128xf32>
    %7 = vector.multi_reduction <add>, %6, %cst_6 [0] : vector<128x128xf32> to vector<128xf32>
    %8 = vector.shape_cast %7 : vector<128xf32> to vector<1x128xf32>
    %9 = tpu.concatenate %5, %8 in 0 : vector<1x128xf32>, vector<1x128xf32> -> vector<2x128xf32>
    %10 = vector.shape_cast %9 : vector<2x128xf32> to vector<1x2x128xf32>
    %c0_7 = arith.constant 0 : index
    %c0_8 = arith.constant 0 : index
    %c0_9 = arith.constant 0 : index
    %11 = vector.load %arg4[%c0_7, %c0_8, %c0_9] : memref<1x2x128xf32, #tpu.memory_space<vmem>>, vector<1x2x128xf32>
    tpu.vector_store %arg4[%c0_7, %c0_8, %c0_9], %10 {strides = array<i32>} : memref<1x2x128xf32, #tpu.memory_space<vmem>>, vector<1x2x128xf32>,
    return
  }
  func.func @transform_0(%arg0: i32) -> (i32, i32) {
    %c0_i32 = arith.constant 0 : i32
    %c0_i32_0 = arith.constant 0 : i32
    return %arg0, %c0_i32 : i32, i32
  }
  func.func @transform_1(%arg0: i32) -> (i32, i32) {
    %c0_i32 = arith.constant 0 : i32
    %c0_i32_0 = arith.constant 0 : i32
    %c0_i32_1 = arith.constant 0 : i32
    return %c0_i32, %c0_i32_0 : i32, i32
  }
  func.func @transform_2(%arg0: i32) -> (i32, i32) {
    %c0_i32 = arith.constant 0 : i32
    %c0_i32_0 = arith.constant 0 : i32
    return %arg0, %c0_i32 : i32, i32
  }
  func.func @transform_3(%arg0: i32) -> (i32, i32, i32) {
    %c0_i32 = arith.constant 0 : i32
    %c0_i32_0 = arith.constant 0 : i32
    %c0_i32_1 = arith.constant 0 : i32
    return %arg0, %c0_i32, %c0_i32_0 : i32, i32, i32
  }
}

module attributes {stable_mosaic.version = 11 : i64} {
  func.func @bn_relu_kernel(%arg0: i32, %arg1: memref<128x128xf32, #tpu.memory_space<vmem>>, %arg2: memref<1x128xf32, #tpu.memory_space<vmem>>, %arg3: memref<1x128xf32, #tpu.memory_space<vmem>>, %arg4: memref<128x128xf32, #tpu.memory_space<vmem>>) attributes {dimension_semantics = [#tpu.dimension_semantics<parallel>], iteration_bounds = array<i64: 4>, scalar_prefetch = 0 : i64, scratch_operands = 0 : i64, tpu.core_type = #tpu.core_type<tc>, window_params = [{transform_indices = @transform_0, window_bounds = array<i64: 128, 128>}, {pipeline_mode = #tpu.pipeline_mode<synchronous>, transform_indices = @transform_1, window_bounds = array<i64: 1, 128>}, {pipeline_mode = #tpu.pipeline_mode<synchronous>, transform_indices = @transform_2, window_bounds = array<i64: 1, 128>}, {transform_indices = @transform_3, window_bounds = array<i64: 128, 128>}]} {
    %c0 = arith.constant 0 : index
    %c0_0 = arith.constant 0 : index
    %0 = vector.load %arg1[%c0, %c0_0] : memref<128x128xf32, #tpu.memory_space<vmem>>, vector<128x128xf32>
    %c0_1 = arith.constant 0 : index
    %c0_2 = arith.constant 0 : index
    %1 = vector.load %arg2[%c0_1, %c0_2] : memref<1x128xf32, #tpu.memory_space<vmem>>, vector<1x128xf32>
    %2 = vector.broadcast %1 : vector<1x128xf32> to vector<128x128xf32>
    %3 = arith.mulf %0, %2 : vector<128x128xf32>
    %c0_3 = arith.constant 0 : index
    %c0_4 = arith.constant 0 : index
    %4 = vector.load %arg3[%c0_3, %c0_4] : memref<1x128xf32, #tpu.memory_space<vmem>>, vector<1x128xf32>
    %5 = vector.broadcast %4 : vector<1x128xf32> to vector<128x128xf32>
    %6 = arith.addf %3, %5 : vector<128x128xf32>
    %cst = arith.constant 0.000000e+00 : f32
    %7 = vector.broadcast %cst : f32 to vector<128x128xf32>
    %8 = arith.maximumf %6, %7 : vector<128x128xf32>
    %c0_5 = arith.constant 0 : index
    %c0_6 = arith.constant 0 : index
    %9 = vector.load %arg4[%c0_5, %c0_6] : memref<128x128xf32, #tpu.memory_space<vmem>>, vector<128x128xf32>
    tpu.vector_store %arg4[%c0_5, %c0_6], %8 {strides = array<i32>} : memref<128x128xf32, #tpu.memory_space<vmem>>, vector<128x128xf32>,
    return
  }
  func.func @transform_0(%arg0: i32) -> (i32, i32) {
    %c0_i32 = arith.constant 0 : i32
    %c0_i32_0 = arith.constant 0 : i32
    return %arg0, %c0_i32 : i32, i32
  }
  func.func @transform_1(%arg0: i32) -> (i32, i32) {
    %c0_i32 = arith.constant 0 : i32
    %c0_i32_0 = arith.constant 0 : i32
    %c0_i32_1 = arith.constant 0 : i32
    return %c0_i32, %c0_i32_0 : i32, i32
  }
  func.func @transform_2(%arg0: i32) -> (i32, i32) {
    %c0_i32 = arith.constant 0 : i32
    %c0_i32_0 = arith.constant 0 : i32
    %c0_i32_1 = arith.constant 0 : i32
    return %c0_i32, %c0_i32_0 : i32, i32
  }
  func.func @transform_3(%arg0: i32) -> (i32, i32) {
    %c0_i32 = arith.constant 0 : i32
    %c0_i32_0 = arith.constant 0 : i32
    return %arg0, %c0_i32 : i32, i32
  }
}

</mosaic_0001>

<llo_original>
// kernel: conv_block_forward.3
$region0: #{conv_block_forward.3}
  #allocation0 [shape = 'u32[]', space=smem, size = 0x4, offset = 0x4, fixed_abs, tag = 'smem constant byte address 0x4 - core index']
  #allocation1 [shape = 'u32[144,128]{1,0:T(1,128)}', space=vmem, size = 0x12000, scoped, tag = 'internal scratch']
  %s0 = inlined_call_operand.vmem [shape: f32[512,128], index: 0, kind: input, shape index: {}, may-alias: {0,3}]
  %s1 = inlined_call_operand.vmem [shape: f32[1,128], index: 1, kind: input, shape index: {}]
  %s2 = inlined_call_operand.vmem [shape: f32[1,128], index: 2, kind: input, shape index: {}]
  %s3 = inlined_call_operand.vmem [shape: f32[512,128], index: 3, kind: output, shape index: {}, may-alias: {0,3}]
  %s4 = sld [smem:[#allocation0]]
  $region45: #{conv_block_forward.3} parent=0
    _
  %s6 = ssub.s32 1, %s4
  %s7 = scalar_select 0, %s6, %s4
  loop: start=0, step=1, limit=6
  $region2: #{conv_block_forward.3} parent=0 // loop_pre_header
    _
  $region3: #{conv_block_forward.3} parent=0 // loop_header
    %s9 = sphi 0, %s13
    %p10 = scmp.ge.s32.totalorder %s9, 6
    %s19 = sphi 0, %s21
    %s22 = sphi 0, %s19
    %s23 = sphi 0, %s22
    %s39 = sphi 0, %s23
    %s43 = sphi 0, %s43
    %s45 = sphi 0, %s43
    %s46 = sphi 0, %s45
    %s60 = sphi 0, %s46
    %s64 = sphi 0, %s64
    %s66 = sphi 0, %s64
    %s67 = sphi 0, %s66
    %s81 = sphi 0, %s67
    %s87 = sphi 0, %s89
    %s90 = sphi 0, %s87
    %s91 = sphi 0, %s90
    %s107 = sphi 0, %s91
  $region4: #{conv_block_forward.3} parent=0 // loop_header_branch
    %12 = sbr.rel (%p10) target = $region8
  $region5: #{conv_block_forward.3} parent=0 // loop_body
    %s14 = ssub.s32 %s9, 1
    %s15 = ssub.s32 %s9, 2
    %s16 = sadd.s32 %s9, 1
    %s17 = ssub.s32 %s9, %s16
    %p18 = scmp.eq.s32.totalorder %s17, 0
    %s20 = sadd.s32 %s19, 1
    %s21 = scalar_select %p18, %s19, %s20
    %p24 = pneg %p18
    %p25 = scmp.eq.s32.totalorder %s9, 3
    %p26 = por %p24, %p25
    %p27 = scmp.ne.s32.totalorder %s19, %s22
    %p28 = scmp.eq.s32.totalorder %s9, 0
    %p29 = por %p27, %p28
    %p30 = scmp.ne.s32.totalorder %s19, %s22
    %p31 = scmp.eq.s32.totalorder %s14, 3
    %p32 = por %p30, %p31
    %p33 = scmp.ne.s32.totalorder %s22, %s23
    %p34 = scmp.eq.s32.totalorder %s14, 0
    %p35 = por %p33, %p34
    %p36 = scmp.ne.s32.totalorder %s22, %s23
    %p37 = scmp.eq.s32.totalorder %s15, 3
    %p38 = por %p36, %p37
    %p40 = scmp.ne.s32.totalorder %s23, %s39
    %p41 = scmp.eq.s32.totalorder %s15, 0
    %p42 = por %p40, %p41
    %s44 = sadd.s32 %s43, 1
    %p47 = scmp.eq.s32.totalorder %s9, 3
    %p48 = scmp.ne.s32.totalorder %s43, %s45
    %p49 = scmp.eq.s32.totalorder %s9, 0
    %p50 = por %p48, %p49
    %p51 = scmp.ne.s32.totalorder %s43, %s45
    %p52 = scmp.eq.s32.totalorder %s14, 3
    %p53 = por %p51, %p52
    %p54 = scmp.ne.s32.totalorder %s45, %s46
    %p55 = scmp.eq.s32.totalorder %s14, 0
    %p56 = por %p54, %p55
    %p57 = scmp.ne.s32.totalorder %s45, %s46
    %p58 = scmp.eq.s32.totalorder %s15, 3
    %p59 = por %p57, %p58
    %p61 = scmp.ne.s32.totalorder %s46, %s60
    %p62 = scmp.eq.s32.totalorder %s15, 0
    %p63 = por %p61, %p62
    %s65 = sadd.s32 %s64, 1
    %p68 = scmp.eq.s32.totalorder %s9, 3
    %p69 = scmp.ne.s32.totalorder %s64, %s66
    %p70 = scmp.eq.s32.totalorder %s9, 0
    %p71 = por %p69, %p70
    %p72 = scmp.ne.s32.totalorder %s64, %s66
    %p73 = scmp.eq.s32.totalorder %s14, 3
    %p74 = por %p72, %p73
    %p75 = scmp.ne.s32.totalorder %s66, %s67
    %p76 = scmp.eq.s32.totalorder %s14, 0
    %p77 = por %p75, %p76
    %p78 = scmp.ne.s32.totalorder %s66, %s67
    %p79 = scmp.eq.s32.totalorder %s15, 3
    %p80 = por %p78, %p79
    %p82 = scmp.ne.s32.totalorder %s67, %s81
    %p83 = scmp.eq.s32.totalorder %s15, 0
    %p84 = por %p82, %p83
    %s85 = ssub.s32 %s9, %s16
    %p86 = scmp.eq.s32.totalorder %s85, 0
    %s88 = sadd.s32 %s87, 1
    %s89 = scalar_select %p86, %s87, %s88
    %p92 = pneg %p86
    %p93 = scmp.eq.s32.totalorder %s9, 3
    %p94 = por %p92, %p93
    %p95 = scmp.ne.s32.totalorder %s87, %s90
    %p96 = scmp.eq.s32.totalorder %s9, 0
    %p97 = por %p95, %p96
    %p98 = scmp.ne.s32.totalorder %s87, %s90
    %p99 = scmp.eq.s32.totalorder %s14, 3
    %p100 = por %p98, %p99
    %p101 = scmp.ne.s32.totalorder %s90, %s91
    %p102 = scmp.eq.s32.totalorder %s14, 0
    %p103 = por %p101, %p102
    %p104 = scmp.ne.s32.totalorder %s90, %s91
    %p105 = scmp.eq.s32.totalorder %s15, 3
    %p106 = por %p104, %p105
    %p108 = scmp.ne.s32.totalorder %s91, %s107
    %p109 = scmp.eq.s32.totalorder %s15, 0
    %p110 = por %p108, %p109
    %p111 = scmp.le.s32.totalorder 1, %s9
    %p112 = scmp.lt.s32.totalorder %s9, 5
    %p113 = pnand %p111, %p112
    %p114 = pneg %p113
    // Predicated region
    $region9: #{conv_block_forward.3} parent=5 // pred_check
      _
    $region10: #{conv_block_forward.3} parent=5 // pred_check_branch
      %116 = sbr.rel (%p113) target = $region12
    $region11: #{conv_block_forward.3} parent=5 // pred_region
      %s117 = ssub.s32 %s9, 1
      // Predicated region
      $region13: #{conv_block_forward.3} parent=11 // pred_check
        %p118 = pneg %p56
      $region14: #{conv_block_forward.3} parent=11 // pred_check_branch
        %120 = sbr.rel (%p118) target = $region16
      $region15: #{conv_block_forward.3} parent=11 // pred_region
        _
      $region16: #{conv_block_forward.3} parent=11 // pred_fallthru
        _
      // Predicated region
      $region17: #{conv_block_forward.3} parent=11 // pred_check
        %p121 = pneg %p77
      $region18: #{conv_block_forward.3} parent=11 // pred_check_branch
        %123 = sbr.rel (%p121) target = $region20
      $region19: #{conv_block_forward.3} parent=11 // pred_region
        _
      $region20: #{conv_block_forward.3} parent=11 // pred_fallthru
        _
    $region12: #{conv_block_forward.3} parent=5 // pred_fallthru
      _
    %p124 = scmp.lt.s32.totalorder %s9, 4
    // Predicated region
    $region21: #{conv_block_forward.3} parent=5 // pred_check
      %p125 = pneg %p124
    $region22: #{conv_block_forward.3} parent=5 // pred_check_branch
      %127 = sbr.rel (%p125) target = $region24
    $region23: #{conv_block_forward.3} parent=5 // pred_region
      // Predicated region
      $region25: #{conv_block_forward.3} parent=23 // pred_check
        %p128 = pneg %p29
      $region26: #{conv_block_forward.3} parent=23 // pred_check_branch
        %130 = sbr.rel (%p128) target = $region28
      $region27: #{conv_block_forward.3} parent=23 // pred_region
        %s131 = smul.u32 16, %s9
        %p132 = scmp.lt.s32.totalorder %s131, 63
        %s133 = scalar_select %p132, %s131, 63
        %s134 = smul.addr %s133, 8
        %s135 = scalar_lea.vmem %s0, %s134
        %s136 = smul.u32 16, %s9
      $region28: #{conv_block_forward.3} parent=23 // pred_fallthru
        _
    $region24: #{conv_block_forward.3} parent=5 // pred_fallthru
      _
    %p137 = scmp.le.s32.totalorder 1, %s9
    %p138 = scmp.lt.s32.totalorder %s9, 5
    %p139 = pnand %p137, %p138
    %p140 = pneg %p139
    // Predicated region
    $region29: #{conv_block_forward.3} parent=5 // pred_check
      _
    $region30: #{conv_block_forward.3} parent=5 // pred_check_branch
      %142 = sbr.rel (%p139) target = $region32
    $region31: #{conv_block_forward.3} parent=5 // pred_region
      %s143 = ssub.s32 %s9, 1
      %s144 = smul.u32 16, %s14
      %p145 = scmp.lt.s32.totalorder %s144, 63
      %s146 = scalar_select %p145, %s144, 63
      %s147 = smul.addr %s146, 8
      %s148 = scalar_lea.vmem %s0, %s147
      %p149 = pneg %p35
      %p150 = pneg %p32
      %p151 = pneg %p56
      %p152 = pneg %p53
      %p153 = pneg %p77
      %p154 = pneg %p74
      %p155 = pneg %p103
      %p156 = pneg %p100
      %s157 = smul.u32 16, %s14
      %p158 = scmp.lt.s32.totalorder %s157, 63
      %s159 = scalar_select %p158, %s157, 63
      %s160 = smul.addr %s159, 8
      %s161 = scalar_lea.vmem %s3, %s160
      %s162 = smul.u32 16, %s14
      %p163 = scmp.lt.s32.totalorder %s162, 63
      %s164 = scalar_select %p163, %s162, 63
      %s165 = smul.addr %s164, 8
      %s166 = scalar_lea.vmem %s0, %s165
      %s167 = smul.u32 16, %s14
      %s168 = smul.u32 16, %s14
      %p169 = scmp.lt.s32.totalorder %s168, 63
      %s170 = scalar_select %p169, %s168, 63
      %s171 = smul.addr %s170, 8
      %s172 = scalar_lea.vmem %s3, %s171
      %s173 = smul.u32 16, %s14
      %v174 = vld [vmem:[%s166] sm:$0xff]
      %v175 = vld [vmem:[%s166 + $0x8] sm:$0xff]
      %v176 = vld [vmem:[%s166 + $0x10] sm:$0xff]
      %v177 = vld [vmem:[%s166 + $0x18] sm:$0xff]
      %v178 = vld [vmem:[%s166 + $0x20] sm:$0xff]
      %v179 = vld [vmem:[%s166 + $0x28] sm:$0xff]
      %v180 = vld [vmem:[%s166 + $0x30] sm:$0xff]
      %v181 = vld [vmem:[%s166 + $0x38] sm:$0xff]
      %v182 = vld [vmem:[%s166 + $0x40] sm:$0xff]
      %v183 = vld [vmem:[%s166 + $0x48] sm:$0xff]
      %v184 = vld [vmem:[%s166 + $0x50] sm:$0xff]
      %v185 = vld [vmem:[%s166 + $0x58] sm:$0xff]
      %v186 = vld [vmem:[%s166 + $0x60] sm:$0xff]
      %v187 = vld [vmem:[%s166 + $0x68] sm:$0xff]
      %v188 = vld [vmem:[%s166 + $0x70] sm:$0xff]
      %v189 = vld [vmem:[%s166 + $0x78] sm:$0xff]
      %v190 = vld [vmem:[%s1] sm:$0x1]
      %v192 = vlaneseq
      %v193 = vshrl.u32 %v192, 7
      %v194 = vsub.s32 0, %v193
      %v195 = vrot.slane %v190, %v194
      %v197 = vmul.f32 %v174, %v195
      %v198 = vmul.f32 %v175, %v195
      %v199 = vmul.f32 %v176, %v195
      %v200 = vmul.f32 %v177, %v195
      %v201 = vmul.f32 %v178, %v195
      %v202 = vmul.f32 %v179, %v195
      %v203 = vmul.f32 %v180, %v195
      %v204 = vmul.f32 %v181, %v195
      %v205 = vmul.f32 %v182, %v195
      %v206 = vmul.f32 %v183, %v195
      %v207 = vmul.f32 %v184, %v195
      %v208 = vmul.f32 %v185, %v195
      %v209 = vmul.f32 %v186, %v195
      %v210 = vmul.f32 %v187, %v195
      %v211 = vmul.f32 %v188, %v195
      %v212 = vmul.f32 %v189, %v195
      %v213 = vld [vmem:[%s2] sm:$0x1]
      %v215 = vlaneseq
      %v216 = vshrl.u32 %v215, 7
      %v217 = vsub.s32 0, %v216
      %v218 = vrot.slane %v213, %v217
      %v220 = vadd.f32 %v197, %v218
      %v221 = vadd.f32 %v198, %v218
      %v222 = vadd.f32 %v199, %v218
      %v223 = vadd.f32 %v200, %v218
      %v224 = vadd.f32 %v201, %v218
      %v225 = vadd.f32 %v202, %v218
      %v226 = vadd.f32 %v203, %v218
      %v227 = vadd.f32 %v204, %v218
      %v228 = vadd.f32 %v205, %v218
      %v229 = vadd.f32 %v206, %v218
      %v230 = vadd.f32 %v207, %v218
      %v231 = vadd.f32 %v208, %v218
      %v232 = vadd.f32 %v209, %v218
      %v233 = vadd.f32 %v210, %v218
      %v234 = vadd.f32 %v211, %v218
      %v235 = vadd.f32 %v212, %v218
      %v236 = vmax.f32 %v220, 0.0
      %v237 = vmax.f32 %v221, 0.0
      %v238 = vmax.f32 %v222, 0.0
      %v239 = vmax.f32 %v223, 0.0
      %v240 = vmax.f32 %v224, 0.0
      %v241 = vmax.f32 %v225, 0.0
      %v242 = vmax.f32 %v226, 0.0
      %v243 = vmax.f32 %v227, 0.0
      %v244 = vmax.f32 %v228, 0.0
      %v245 = vmax.f32 %v229, 0.0
      %v246 = vmax.f32 %v230, 0.0
      %v247 = vmax.f32 %v231, 0.0
      %v248 = vmax.f32 %v232, 0.0
      %v249 = vmax.f32 %v233, 0.0
      %v250 = vmax.f32 %v234, 0.0
      %v251 = vmax.f32 %v235, 0.0
      %252 = vst [vmem:[%s172] sm:$0xff] %v236
      %253 = vst [vmem:[%s172 + $0x8] sm:$0xff] %v237
      %254 = vst [vmem:[%s172 + $0x10] sm:$0xff] %v238
      %255 = vst [vmem:[%s172 + $0x18] sm:$0xff] %v239
      %256 = vst [vmem:[%s172 + $0x20] sm:$0xff] %v240
      %257 = vst [vmem:[%s172 + $0x28] sm:$0xff] %v241
      %258 = vst [vmem:[%s172 + $0x30] sm:$0xff] %v242
      %259 = vst [vmem:[%s172 + $0x38] sm:$0xff] %v243
      %260 = vst [vmem:[%s172 + $0x40] sm:$0xff] %v244
      %261 = vst [vmem:[%s172 + $0x48] sm:$0xff] %v245
      %262 = vst [vmem:[%s172 + $0x50] sm:$0xff] %v246
      %263 = vst [vmem:[%s172 + $0x58] sm:$0xff] %v247
      %264 = vst [vmem:[%s172 + $0x60] sm:$0xff] %v248
      %265 = vst [vmem:[%s172 + $0x68] sm:$0xff] %v249
      %266 = vst [vmem:[%s172 + $0x70] sm:$0xff] %v250
      %267 = vst [vmem:[%s172 + $0x78] sm:$0xff] %v251
      %s268 = smul.u32 16, %s14
      %p269 = scmp.lt.s32.totalorder %s268, 63
      %s270 = scalar_select %p269, %s268, 63
      %s271 = smul.addr %s270, 8
      %s272 = scalar_lea.vmem %s3, %s271
      // Predicated region
      $region33: #{conv_block_forward.3} parent=31 // pred_check
        %p273 = pneg %p100
      $region34: #{conv_block_forward.3} parent=31 // pred_check_branch
        %275 = sbr.rel (%p273) target = $region36
      $region35: #{conv_block_forward.3} parent=31 // pred_region
        %s276 = smul.u32 16, %s14
      $region36: #{conv_block_forward.3} parent=31 // pred_fallthru
        _
    $region32: #{conv_block_forward.3} parent=5 // pred_fallthru
      _
    %p277 = scmp.le.s32.totalorder 2, %s9
    // Predicated region
    $region37: #{conv_block_forward.3} parent=5 // pred_check
      %p278 = pneg %p277
    $region38: #{conv_block_forward.3} parent=5 // pred_check_branch
      %280 = sbr.rel (%p278) target = $region40
    $region39: #{conv_block_forward.3} parent=5 // pred_region
      %s281 = ssub.s32 %s9, 2
      // Predicated region
      $region41: #{conv_block_forward.3} parent=39 // pred_check
        %p282 = pneg %p106
      $region42: #{conv_block_forward.3} parent=39 // pred_check_branch
        %284 = sbr.rel (%p282) target = $region44
      $region43: #{conv_block_forward.3} parent=39 // pred_region
        %s285 = smul.u32 16, %s15
        %p286 = scmp.lt.s32.totalorder %s285, 63
        %s287 = scalar_select %p286, %s285, 63
        %s288 = smul.addr %s287, 8
        %s289 = scalar_lea.vmem %s3, %s288
      $region44: #{conv_block_forward.3} parent=39 // pred_fallthru
        _
    $region40: #{conv_block_forward.3} parent=5 // pred_fallthru
      _
  $region6: #{conv_block_forward.3} parent=0 // loop_footer
    %s13 = sadd.s32 1, %s9
  $region7: #{conv_block_forward.3} parent=0 // loop_footer_branch
    %8 = sbr.rel target = $region3
  $region8: #{conv_block_forward.3} parent=0 // loop_exit
    _

// kernel: conv_block_forward.2
$region0: #{conv_block_forward.2}
  #allocation0 [shape = 'u32[]', space=smem, size = 0x4, offset = 0x4, fixed_abs, tag = 'smem constant byte address 0x4 - core index']
  #allocation1 [shape = 'u32[144,128]{1,0:T(1,128)}', space=vmem, size = 0x12000, scoped, tag = 'internal scratch']
  %s0 = inlined_call_operand.vmem [shape: bf16[512,72], index: 0, kind: input, shape index: {}]
  %s1 = inlined_call_operand.vmem [shape: bf16[72,128], index: 1, kind: input, shape index: {}]
  %s2 = inlined_call_operand.vmem [shape: f32[512,128], index: 2, kind: output, shape index: {0}]
  %s3 = inlined_call_operand.vmem [shape: f32[4,2,128], index: 3, kind: output, shape index: {1}]
  %4 = xla_tuple %s2, %s3
  %s5 = sld [smem:[#allocation0]]
  $region49: #{conv_block_forward.2} parent=0
    _
  %s7 = ssub.s32 1, %s5
  %s8 = scalar_select 0, %s7, %s5
  loop: start=0, step=1, limit=6
  $region2: #{conv_block_forward.2} parent=0 // loop_pre_header
    _
  $region3: #{conv_block_forward.2} parent=0 // loop_header
    %s10 = sphi 0, %s14
    %p11 = scmp.ge.s32.totalorder %s10, 6
    %s20 = sphi 0, %s22
    %s23 = sphi 0, %s20
    %s24 = sphi 0, %s23
    %s40 = sphi 0, %s24
    %s44 = sphi 0, %s44
    %s46 = sphi 0, %s44
    %s47 = sphi 0, %s46
    %s61 = sphi 0, %s47
    %s67 = sphi 0, %s69
    %s70 = sphi 0, %s67
    %s71 = sphi 0, %s70
    %s87 = sphi 0, %s71
    %s93 = sphi 0, %s95
    %s96 = sphi 0, %s93
    %s97 = sphi 0, %s96
    %s113 = sphi 0, %s97
  $region4: #{conv_block_forward.2} parent=0 // loop_header_branch
    %13 = sbr.rel (%p11) target = $region8
  $region5: #{conv_block_forward.2} parent=0 // loop_body
    %s15 = ssub.s32 %s10, 1
    %s16 = ssub.s32 %s10, 2
    %s17 = sadd.s32 %s10, 1
    %s18 = ssub.s32 %s10, %s17
    %p19 = scmp.eq.s32.totalorder %s18, 0
    %s21 = sadd.s32 %s20, 1
    %s22 = scalar_select %p19, %s20, %s21
    %p25 = pneg %p19
    %p26 = scmp.eq.s32.totalorder %s10, 3
    %p27 = por %p25, %p26
    %p28 = scmp.ne.s32.totalorder %s20, %s23
    %p29 = scmp.eq.s32.totalorder %s10, 0
    %p30 = por %p28, %p29
    %p31 = scmp.ne.s32.totalorder %s20, %s23
    %p32 = scmp.eq.s32.totalorder %s15, 3
    %p33 = por %p31, %p32
    %p34 = scmp.ne.s32.totalorder %s23, %s24
    %p35 = scmp.eq.s32.totalorder %s15, 0
    %p36 = por %p34, %p35
    %p37 = scmp.ne.s32.totalorder %s23, %s24
    %p38 = scmp.eq.s32.totalorder %s16, 3
    %p39 = por %p37, %p38
    %p41 = scmp.ne.s32.totalorder %s24, %s40
    %p42 = scmp.eq.s32.totalorder %s16, 0
    %p43 = por %p41, %p42
    %s45 = sadd.s32 %s44, 1
    %p48 = scmp.eq.s32.totalorder %s10, 3
    %p49 = scmp.ne.s32.totalorder %s44, %s46
    %p50 = scmp.eq.s32.totalorder %s10, 0
    %p51 = por %p49, %p50
    %p52 = scmp.ne.s32.totalorder %s44, %s46
    %p53 = scmp.eq.s32.totalorder %s15, 3
    %p54 = por %p52, %p53
    %p55 = scmp.ne.s32.totalorder %s46, %s47
    %p56 = scmp.eq.s32.totalorder %s15, 0
    %p57 = por %p55, %p56
    %p58 = scmp.ne.s32.totalorder %s46, %s47
    %p59 = scmp.eq.s32.totalorder %s16, 3
    %p60 = por %p58, %p59
    %p62 = scmp.ne.s32.totalorder %s47, %s61
    %p63 = scmp.eq.s32.totalorder %s16, 0
    %p64 = por %p62, %p63
    %s65 = ssub.s32 %s10, %s17
    %p66 = scmp.eq.s32.totalorder %s65, 0
    %s68 = sadd.s32 %s67, 1
    %s69 = scalar_select %p66, %s67, %s68
    %p72 = pneg %p66
    %p73 = scmp.eq.s32.totalorder %s10, 3
    %p74 = por %p72, %p73
    %p75 = scmp.ne.s32.totalorder %s67, %s70
    %p76 = scmp.eq.s32.totalorder %s10, 0
    %p77 = por %p75, %p76
    %p78 = scmp.ne.s32.totalorder %s67, %s70
    %p79 = scmp.eq.s32.totalorder %s15, 3
    %p80 = por %p78, %p79
    %p81 = scmp.ne.s32.totalorder %s70, %s71
    %p82 = scmp.eq.s32.totalorder %s15, 0
    %p83 = por %p81, %p82
    %p84 = scmp.ne.s32.totalorder %s70, %s71
    %p85 = scmp.eq.s32.totalorder %s16, 3
    %p86 = por %p84, %p85
    %p88 = scmp.ne.s32.totalorder %s71, %s87
    %p89 = scmp.eq.s32.totalorder %s16, 0
    %p90 = por %p88, %p89
    %s91 = ssub.s32 %s10, %s17
    %p92 = scmp.eq.s32.totalorder %s91, 0
    %s94 = sadd.s32 %s93, 1
    %s95 = scalar_select %p92, %s93, %s94
    %p98 = pneg %p92
    %p99 = scmp.eq.s32.totalorder %s10, 3
    %p100 = por %p98, %p99
    %p101 = scmp.ne.s32.totalorder %s93, %s96
    %p102 = scmp.eq.s32.totalorder %s10, 0
    %p103 = por %p101, %p102
    %p104 = scmp.ne.s32.totalorder %s93, %s96
    %p105 = scmp.eq.s32.totalorder %s15, 3
    %p106 = por %p104, %p105
    %p107 = scmp.ne.s32.totalorder %s96, %s97
    %p108 = scmp.eq.s32.totalorder %s15, 0
    %p109 = por %p107, %p108
    %p110 = scmp.ne.s32.totalorder %s96, %s97
    %p111 = scmp.eq.s32.totalorder %s16, 3
    %p112 = por %p110, %p111
    %p114 = scmp.ne.s32.totalorder %s97, %s113
    %p115 = scmp.eq.s32.totalorder %s16, 0
    %p116 = por %p114, %p115
    %p117 = scmp.le.s32.totalorder 1, %s10
    %p118 = scmp.lt.s32.totalorder %s10, 5
    %p119 = pnand %p117, %p118
    %p120 = pneg %p119
    // Predicated region
    $region9: #{conv_block_forward.2} parent=5 // pred_check
      _
    $region10: #{conv_block_forward.2} parent=5 // pred_check_branch
      %122 = sbr.rel (%p119) target = $region12
    $region11: #{conv_block_forward.2} parent=5 // pred_region
      %s123 = ssub.s32 %s10, 1
      // Predicated region
      $region13: #{conv_block_forward.2} parent=11 // pred_check
        %p124 = pneg %p57
      $region14: #{conv_block_forward.2} parent=11 // pred_check_branch
        %126 = sbr.rel (%p124) target = $region16
      $region15: #{conv_block_forward.2} parent=11 // pred_region
        _
      $region16: #{conv_block_forward.2} parent=11 // pred_fallthru
        _
    $region12: #{conv_block_forward.2} parent=5 // pred_fallthru
      _
    %p127 = scmp.lt.s32.totalorder %s10, 4
    // Predicated region
    $region17: #{conv_block_forward.2} parent=5 // pred_check
      %p128 = pneg %p127
    $region18: #{conv_block_forward.2} parent=5 // pred_check_branch
      %130 = sbr.rel (%p128) target = $region20
    $region19: #{conv_block_forward.2} parent=5 // pred_region
      // Predicated region
      $region21: #{conv_block_forward.2} parent=19 // pred_check
        %p131 = pneg %p30
      $region22: #{conv_block_forward.2} parent=19 // pred_check_branch
        %133 = sbr.rel (%p131) target = $region24
      $region23: #{conv_block_forward.2} parent=19 // pred_region
        %s134 = smul.u32 16, %s10
        %p135 = scmp.lt.s32.totalorder %s134, 63
        %s136 = scalar_select %p135, %s134, 63
        %s137 = smul.addr %s136, 4
        %s138 = scalar_lea.vmem %s0, %s137
        %s139 = smul.u32 16, %s10
      $region24: #{conv_block_forward.2} parent=19 // pred_fallthru
        _
    $region20: #{conv_block_forward.2} parent=5 // pred_fallthru
      _
    %p140 = scmp.le.s32.totalorder 1, %s10
    %p141 = scmp.lt.s32.totalorder %s10, 5
    %p142 = pnand %p140, %p141
    %p143 = pneg %p142
    // Predicated region
    $region25: #{conv_block_forward.2} parent=5 // pred_check
      _
    $region26: #{conv_block_forward.2} parent=5 // pred_check_branch
      %145 = sbr.rel (%p142) target = $region28
    $region27: #{conv_block_forward.2} parent=5 // pred_region
      %s146 = ssub.s32 %s10, 1
      %s147 = smul.u32 16, %s15
      %p148 = scmp.lt.s32.totalorder %s147, 63
      %s149 = scalar_select %p148, %s147, 63
      %s150 = smul.addr %s149, 4
      %s151 = scalar_lea.vmem %s0, %s150
      %p152 = pneg %p36
      %p153 = pneg %p33
      %p154 = pneg %p57
      %p155 = pneg %p54
      %p156 = pneg %p83
      %p157 = pneg %p80
      %s158 = smul.u32 16, %s15
      %p159 = scmp.lt.s32.totalorder %s158, 63
      %s160 = scalar_select %p159, %s158, 63
      %s161 = smul.addr %s160, 8
      %s162 = scalar_lea.vmem %s2, %s161
      %p163 = pneg %p109
      %p164 = pneg %p106
      %p165 = scmp.lt.s32.totalorder %s15, 3
      %s166 = scalar_select %p165, %s15, 3
      %s167 = smul.addr %s166, 2
      %s168 = scalar_lea.vmem %s3, %s167
      %s169 = smul.u32 16, %s15
      %p170 = scmp.lt.s32.totalorder %s169, 63
      %s171 = scalar_select %p170, %s169, 63
      %s172 = smul.addr %s171, 4
      %s173 = scalar_lea.vmem %s0, %s172
      %s174 = smul.u32 16, %s15
      %s175 = smul.u32 16, %s15
      %p176 = scmp.lt.s32.totalorder %s175, 63
      %s177 = scalar_select %p176, %s175, 63
      %s178 = smul.addr %s177, 8
      %s179 = scalar_lea.vmem %s2, %s178
      %s180 = smul.u32 16, %s15
      %p181 = scmp.lt.s32.totalorder %s15, 3
      %s182 = scalar_select %p181, %s15, 3
      %s183 = smul.addr %s182, 2
      %s184 = scalar_lea.vmem %s3, %s183
      %v186 = vld [vmem:[%s173] sm:$0xf]
      %v187 = vld [vmem:[%s173 + $0x4] sm:$0xf]
      %v188 = vld [vmem:[%s173 + $0x8] sm:$0xf]
      %v189 = vld [vmem:[%s173 + $0xc] sm:$0xf]
      %v190 = vld [vmem:[%s173 + $0x10] sm:$0xf]
      %v191 = vld [vmem:[%s173 + $0x14] sm:$0xf]
      %v192 = vld [vmem:[%s173 + $0x18] sm:$0xf]
      %v193 = vld [vmem:[%s173 + $0x1c] sm:$0xf]
      %v194 = vld [vmem:[%s173 + $0x20] sm:$0xf]
      %v195 = vld [vmem:[%s173 + $0x24] sm:$0xf]
      %v196 = vld [vmem:[%s173 + $0x28] sm:$0xf]
      %v197 = vld [vmem:[%s173 + $0x2c] sm:$0xf]
      %v198 = vld [vmem:[%s173 + $0x30] sm:$0xf]
      %v199 = vld [vmem:[%s173 + $0x34] sm:$0xf]
      %v200 = vld [vmem:[%s173 + $0x38] sm:$0xf]
      %v201 = vld [vmem:[%s173 + $0x3c] sm:$0xf]
      %v202 = vld [vmem:[%s1] sm:$0xf]
      %v203 = vld [vmem:[%s1 + $0x4] sm:$0xf]
      %v204 = vld [vmem:[%s1 + $0x8] sm:$0xf]
      %v205 = vld [vmem:[%s1 + $0xc] sm:$0xf]
      %v206 = vld [vmem:[%s1 + $0x10] sm:$0xf]
      %v207 = vld [vmem:[%s1 + $0x14] sm:$0xf]
      %v208 = vld [vmem:[%s1 + $0x18] sm:$0xf]
      %v209 = vld [vmem:[%s1 + $0x1c] sm:$0xf]
      %v210 = vld [vmem:[%s1 + $0x20] sm:$0xf]
      %v227 = vunpack.c.l.b16 %v186
      %v228 = vunpack.c.l.b16 %v187
      %v229 = vunpack.c.l.b16 %v188
      %v230 = vunpack.c.l.b16 %v189
      %v231 = vunpack.c.l.b16 %v190
      %v232 = vunpack.c.l.b16 %v191
      %v233 = vunpack.c.l.b16 %v192
      %v234 = vunpack.c.l.b16 %v193
      %v235 = vunpack.c.l.b16 %v194
      %v236 = vunpack.c.l.b16 %v195
      %v237 = vunpack.c.l.b16 %v196
      %v238 = vunpack.c.l.b16 %v197
      %v239 = vunpack.c.l.b16 %v198
      %v240 = vunpack.c.l.b16 %v199
      %v241 = vunpack.c.l.b16 %v200
      %v242 = vunpack.c.l.b16 %v201
      %v243 = vpack.c.b16 %v228, %v227
      %v244 = vpack.c.b16 %v230, %v229
      %v245 = vpack.c.b16 %v232, %v231
      %v246 = vpack.c.b16 %v234, %v233
      %v247 = vpack.c.b16 %v236, %v235
      %v248 = vpack.c.b16 %v238, %v237
      %v249 = vpack.c.b16 %v240, %v239
      %v250 = vpack.c.b16 %v242, %v241
      %v260 = vunpack.c.l.b16 %v202
      %v261 = vunpack.c.l.b16 %v203
      %v262 = vunpack.c.l.b16 %v204
      %v263 = vunpack.c.l.b16 %v205
      %v264 = vunpack.c.l.b16 %v206
      %v265 = vunpack.c.l.b16 %v207
      %v266 = vunpack.c.l.b16 %v208
      %v267 = vunpack.c.l.b16 %v209
      %v268 = vunpack.c.l.b16 %v210
      %v269 = vpack.c.b16 %v261, %v260
      %v270 = vpack.c.b16 %v263, %v262
      %v271 = vpack.c.b16 %v265, %v264
      %v272 = vpack.c.b16 %v267, %v266
      %v273 = vpack.c.b16 %v268, %v268
      %vm278 = vcmask 588800
      %v280 = vsel %vm278, %v243, 0
      %v283 = vsel %vm278, %v244, 0
      %v286 = vsel %vm278, %v245, 0
      %v289 = vsel %vm278, %v246, 0
      %v292 = vsel %vm278, %v247, 0
      %v295 = vsel %vm278, %v248, 0
      %v298 = vsel %vm278, %v249, 0
      %v301 = vsel %vm278, %v250, 0
      %vm303 = vcmask 1043456
      %v305 = vsel %vm303, %v273, 0
      %307 = vmatprep.subr.bf16.mxu0 0
      %308 = vmatpush1.bf16.msra.mxu0 %v269
      %309 = vmatprep.subr.bf16.mxu0 0
      %310 = vmatpush1.bf16.msra.mxu0 %v270
      %311 = vmatprep.subr.bf16.mxu0 0
      %312 = vmatpush1.bf16.msra.mxu0 %v271
      %313 = vmatprep.subr.bf16.mxu0 0
      %314 = vmatpush1.bf16.msra.mxu0 %v272
      %315 = vmatprep.subr.bf16.mxu0 0
      %316 = vmatpush1.bf16.msra.mxu0 %v305
      %317 = vmatprep.subr.bf16.mxu0 0
      %318 = vmatpush1.bf16.msra.mxu0 0
      %319 = vmatprep.subr.bf16.mxu0 0
      %320 = vmatpush1.bf16.msra.mxu0 0
      %321 = vmatprep.subr.bf16.mxu0 0
      %322 = vmatpush1.bf16.msra.mxu0 0
      %323 = vmatprep.subr.bf16.mxu0 0
      %324 = vmatpush1.bf16.msra.mxu0 0
      %325 = vmatprep.subr.bf16.mxu0 0
      %326 = vmatpush1.bf16.msra.mxu0 0
      %327 = vmatprep.subr.bf16.mxu0 0
      %328 = vmatpush1.bf16.msra.mxu0 0
      %329 = vmatprep.subr.bf16.mxu0 0
      %330 = vmatpush1.bf16.msra.mxu0 0
      %331 = vmatprep.subr.bf16.mxu0 0
      %332 = vmatpush1.bf16.msra.mxu0 0
      %333 = vmatprep.subr.bf16.mxu0 0
      %334 = vmatpush1.bf16.msra.mxu0 0
      %335 = vmatprep.subr.bf16.mxu0 0
      %336 = vmatpush1.bf16.msra.mxu0 0
      %337 = vmatprep.subr.bf16.mxu0 0
      %338 = vmatpush1.bf16.msra.mxu0 0
      %339 = vmatprep.mubr.bf16.mxu0 0
      %340 = vmatmul.mubr.bf16.gmra.mrb[0].mxu0 %v280
      %v341 = vpop.f32.mrb[0].mxu0
      %v342 = vadd.f32 0.0, %v341
      %v343 = vpop.f32.mrb[0].mxu0
      %v344 = vpop.f32.mrb[0].mxu0
      %v345 = vadd.f32 0.0, %v344
      %v346 = vpop.f32.mrb[0].mxu0
      %347 = vmatprep.mubr.bf16.mxu0 0
      %348 = vmatmul.mubr.bf16.gmra.mrb[0].mxu0 %v283
      %v349 = vpop.f32.mrb[0].mxu0
      %v350 = vadd.f32 0.0, %v349
      %v351 = vpop.f32.mrb[0].mxu0
      %v352 = vpop.f32.mrb[0].mxu0
      %v353 = vadd.f32 0.0, %v352
      %v354 = vpop.f32.mrb[0].mxu0
      %355 = vmatprep.mubr.bf16.mxu0 0
      %356 = vmatmul.mubr.bf16.gmra.mrb[0].mxu0 %v286
      %v357 = vpop.f32.mrb[0].mxu0
      %v358 = vadd.f32 0.0, %v357
      %v359 = vpop.f32.mrb[0].mxu0
      %v360 = vpop.f32.mrb[0].mxu0
      %v361 = vadd.f32 0.0, %v360
      %v362 = vpop.f32.mrb[0].mxu0
      %363 = vmatprep.mubr.bf16.mxu0 0
      %364 = vmatmul.mubr.bf16.gmra.mrb[0].mxu0 %v289
      %v365 = vpop.f32.mrb[0].mxu0
      %v366 = vadd.f32 0.0, %v365
      %v367 = vpop.f32.mrb[0].mxu0
      %v368 = vpop.f32.mrb[0].mxu0
      %v369 = vadd.f32 0.0, %v368
      %v370 = vpop.f32.mrb[0].mxu0
      %371 = vmatprep.mubr.bf16.mxu0 0
      %372 = vmatmul.mubr.bf16.gmra.mrb[0].mxu0 %v292
      %v373 = vpop.f32.mrb[0].mxu0
      %v374 = vadd.f32 0.0, %v373
      %v375 = vpop.f32.mrb[0].mxu0
      %v376 = vpop.f32.mrb[0].mxu0
      %v377 = vadd.f32 0.0, %v376
      %v378 = vpop.f32.mrb[0].mxu0
      %379 = vmatprep.mubr.bf16.mxu0 0
      %380 = vmatmul.mubr.bf16.gmra.mrb[0].mxu0 %v295
      %v381 = vpop.f32.mrb[0].mxu0
      %v382 = vadd.f32 0.0, %v381
      %v383 = vpop.f32.mrb[0].mxu0
      %v384 = vpop.f32.mrb[0].mxu0
      %v385 = vadd.f32 0.0, %v384
      %v386 = vpop.f32.mrb[0].mxu0
      %387 = vmatprep.mubr.bf16.mxu0 0
      %388 = vmatmul.mubr.bf16.gmra.mrb[0].mxu0 %v298
      %v389 = vpop.f32.mrb[0].mxu0
      %v390 = vadd.f32 0.0, %v389
      %v391 = vpop.f32.mrb[0].mxu0
      %v392 = vpop.f32.mrb[0].mxu0
      %v393 = vadd.f32 0.0, %v392
      %v394 = vpop.f32.mrb[0].mxu0
      %395 = vmatprep.mubr.bf16.mxu0 0
      %396 = vmatmul.mubr.bf16.gmra.mrb[0].mxu0 %v301
      %v397 = vpop.f32.mrb[0].mxu0
      %v398 = vadd.f32 0.0, %v397
      %v399 = vpop.f32.mrb[0].mxu0
      %v400 = vpop.f32.mrb[0].mxu0
      %v401 = vadd.f32 0.0, %v400
      %v402 = vpop.f32.mrb[0].mxu0
      %403 = vdwg.mxu0
      %404 = vst [vmem:[%s179] sm:$0xff] %v342
      %405 = vst [vmem:[%s179 + $0x8] sm:$0xff] %v345
      %406 = vst [vmem:[%s179 + $0x10] sm:$0xff] %v350
      %407 = vst [vmem:[%s179 + $0x18] sm:$0xff] %v353
      %408 = vst [vmem:[%s179 + $0x20] sm:$0xff] %v358
      %409 = vst [vmem:[%s179 + $0x28] sm:$0xff] %v361
      %410 = vst [vmem:[%s179 + $0x30] sm:$0xff] %v366
      %411 = vst [vmem:[%s179 + $0x38] sm:$0xff] %v369
      %412 = vst [vmem:[%s179 + $0x40] sm:$0xff] %v374
      %413 = vst [vmem:[%s179 + $0x48] sm:$0xff] %v377
      %414 = vst [vmem:[%s179 + $0x50] sm:$0xff] %v382
      %415 = vst [vmem:[%s179 + $0x58] sm:$0xff] %v385
      %416 = vst [vmem:[%s179 + $0x60] sm:$0xff] %v390
      %417 = vst [vmem:[%s179 + $0x68] sm:$0xff] %v393
      %418 = vst [vmem:[%s179 + $0x70] sm:$0xff] %v398
      %419 = vst [vmem:[%s179 + $0x78] sm:$0xff] %v401
      %v420 = vadd.f32 %v342, %v345
      %v421 = vadd.f32 %v420, %v350
      %v422 = vadd.f32 %v421, %v353
      %v423 = vadd.f32 %v422, %v358
      %v424 = vadd.f32 %v423, %v361
      %v425 = vadd.f32 %v424, %v366
      %v426 = vadd.f32 %v425, %v369
      %v427 = vadd.f32 %v426, %v374
      %v428 = vadd.f32 %v427, %v377
      %v429 = vadd.f32 %v428, %v382
      %v430 = vadd.f32 %v429, %v385
      %v431 = vadd.f32 %v430, %v390
      %v432 = vadd.f32 %v431, %v393
      %v433 = vadd.f32 %v432, %v398
      %v434 = vadd.f32 %v433, %v401
      %v435 = vrot.slane %v434, 4
      %v436 = vadd.f32 %v434, %v435
      %v437 = vrot.slane %v436, 2
      %v438 = vadd.f32 %v436, %v437
      %v439 = vrot.slane %v438, 1
      %v440 = vadd.f32 %v438, %v439
      %v441 = vmul.f32 %v342, %v342
      %v442 = vmul.f32 %v345, %v345
      %v443 = vmul.f32 %v350, %v350
      %v444 = vmul.f32 %v353, %v353
      %v445 = vmul.f32 %v358, %v358
      %v446 = vmul.f32 %v361, %v361
      %v447 = vmul.f32 %v366, %v366
      %v448 = vmul.f32 %v369, %v369
      %v449 = vmul.f32 %v374, %v374
      %v450 = vmul.f32 %v377, %v377
      %v451 = vmul.f32 %v382, %v382
      %v452 = vmul.f32 %v385, %v385
      %v453 = vmul.f32 %v390, %v390
      %v454 = vmul.f32 %v393, %v393
      %v455 = vmul.f32 %v398, %v398
      %v456 = vmul.f32 %v401, %v401
      %v457 = vadd.f32 %v441, %v442
      %v458 = vadd.f32 %v457, %v443
      %v459 = vadd.f32 %v458, %v444
      %v460 = vadd.f32 %v459, %v445
      %v461 = vadd.f32 %v460, %v446
      %v462 = vadd.f32 %v461, %v447
      %v463 = vadd.f32 %v462, %v448
      %v464 = vadd.f32 %v463, %v449
      %v465 = vadd.f32 %v464, %v450
      %v466 = vadd.f32 %v465, %v451
      %v467 = vadd.f32 %v466, %v452
      %v468 = vadd.f32 %v467, %v453
      %v469 = vadd.f32 %v468, %v454
      %v470 = vadd.f32 %v469, %v455
      %v471 = vadd.f32 %v470, %v456
      %v472 = vrot.slane %v471, 4
      %v473 = vadd.f32 %v471, %v472
      %v474 = vrot.slane %v473, 2
      %v475 = vadd.f32 %v473, %v474
      %v476 = vrot.slane %v475, 1
      %v477 = vadd.f32 %v475, %v476
      %vm478 = vcmask 1040384
      %v479 = vsel %vm478, %v440, %v477
      %480 = vst [vmem:[%s184] sm:$0x3] %v479
      %s481 = smul.u32 16, %s15
      %p482 = scmp.lt.s32.totalorder %s481, 63
      %s483 = scalar_select %p482, %s481, 63
      %s484 = smul.addr %s483, 8
      %s485 = scalar_lea.vmem %s2, %s484
      %p486 = scmp.lt.s32.totalorder %s15, 3
      %s487 = scalar_select %p486, %s15, 3
      %s488 = smul.addr %s487, 2
      %s489 = scalar_lea.vmem %s3, %s488
      // Predicated region
      $region29: #{conv_block_forward.2} parent=27 // pred_check
        %p490 = pneg %p80
      $region30: #{conv_block_forward.2} parent=27 // pred_check_branch
        %492 = sbr.rel (%p490) target = $region32
      $region31: #{conv_block_forward.2} parent=27 // pred_region
        %s493 = smul.u32 16, %s15
      $region32: #{conv_block_forward.2} parent=27 // pred_fallthru
        _
      // Predicated region
      $region33: #{conv_block_forward.2} parent=27 // pred_check
        %p494 = pneg %p106
      $region34: #{conv_block_forward.2} parent=27 // pred_check_branch
        %496 = sbr.rel (%p494) target = $region36
      $region35: #{conv_block_forward.2} parent=27 // pred_region
        _
      $region36: #{conv_block_forward.2} parent=27 // pred_fallthru
        _
    $region28: #{conv_block_forward.2} parent=5 // pred_fallthru
      _
    %p497 = scmp.le.s32.totalorder 2, %s10
    // Predicated region
    $region37: #{conv_block_forward.2} parent=5 // pred_check
      %p498 = pneg %p497
    $region38: #{conv_block_forward.2} parent=5 // pred_check_branch
      %500 = sbr.rel (%p498) target = $region40
    $region39: #{conv_block_forward.2} parent=5 // pred_region
      %s501 = ssub.s32 %s10, 2
      // Predicated region
      $region41: #{conv_block_forward.2} parent=39 // pred_check
        %p502 = pneg %p86
      $region42: #{conv_block_forward.2} parent=39 // pred_check_branch
        %504 = sbr.rel (%p502) target = $region44
      $region43: #{conv_block_forward.2} parent=39 // pred_region
        %s505 = smul.u32 16, %s16
        %p506 = scmp.lt.s32.totalorder %s505, 63
        %s507 = scalar_select %p506, %s505, 63
        %s508 = smul.addr %s507, 8
        %s509 = scalar_lea.vmem %s2, %s508
      $region44: #{conv_block_forward.2} parent=39 // pred_fallthru
        _
      // Predicated region
      $region45: #{conv_block_forward.2} parent=39 // pred_check
        %p510 = pneg %p112
      $region46: #{conv_block_forward.2} parent=39 // pred_check_branch
        %512 = sbr.rel (%p510) target = $region48
      $region47: #{conv_block_forward.2} parent=39 // pred_region
        %p513 = scmp.lt.s32.totalorder %s16, 3
        %s514 = scalar_select %p513, %s16, 3
        %s515 = smul.addr %s514, 2
        %s516 = scalar_lea.vmem %s3, %s515
      $region48: #{conv_block_forward.2} parent=39 // pred_fallthru
        _
    $region40: #{conv_block_forward.2} parent=5 // pred_fallthru
      _
  $region6: #{conv_block_forward.2} parent=0 // loop_footer
    %s14 = sadd.s32 1, %s10
  $region7: #{conv_block_forward.2} parent=0 // loop_footer_branch
    %9 = sbr.rel target = $region3
  $region8: #{conv_block_forward.2} parent=0 // loop_exit
    _

</llo_original>
